<compile_context>
chip_gen: v5e
topology: v5e:2x2
jax: 0.10.0
libtpu: 0.0.40
codegen_flags: <defaults>
</compile_context>

<pallas_src>
import functools

import jax
import jax.numpy as jnp
from jax import lax
from jax.experimental import pallas as pl
from jax.experimental.pallas import tpu as pltpu


def _basic_conv_kernel(x_ref, w_ref, shift_ref, o_ref, xcol_ref, *,
                       kh, ph, h, w, h_out, b_tile, cin, apply_relu):
    # x_ref    : (B_tile, Cin, H*W)        unpadded NCHW image block (spatial flattened)
    # w_ref    : (Cout, kh*Cin)            BN-scale-folded weight, rows tap-major
    # shift_ref: (Cout, 1) f32             fused BN shift (+ optional conv bias)
    # o_ref    : (B_tile, Cout, S)         S = H_out * W
    # xcol_ref : VMEM scratch (kh*Cin, B_tile*S)  im2col RHS (holds the zero padding)
    s = h_out * w

    # Build the im2col RHS in VMEM.  The zero strips implement the (ph, 0) spatial padding,
    # so the wrapper never writes a padded copy of x back to HBM.
    for t in range(kh):
        r0, r1 = t * cin, (t + 1) * cin
        oh0 = max(0, ph - t)                     # first valid output row for this tap
        oh1 = min(h_out, h + ph - t)             # one past the last valid output row
        ih0, ih1 = oh0 + t - ph, oh1 + t - ph    # corresponding input rows
        for b in range(b_tile):
            base = b * s
            if oh0 > 0:                          # top padding rows -> zeros
                xcol_ref[r0:r1, base:base + oh0 * w] = jnp.zeros(
                    (cin, oh0 * w), xcol_ref.dtype)
            if oh1 < h_out:                      # bottom padding rows -> zeros
                xcol_ref[r0:r1, base + oh1 * w:base + h_out * w] = jnp.zeros(
                    (cin, (h_out - oh1) * w), xcol_ref.dtype)
            if oh1 > oh0:                        # valid rows: contiguous copy from x
                xcol_ref[r0:r1, base + oh0 * w:base + oh1 * w] = \
                    x_ref[b, :, ih0 * w:ih1 * w]

    # One MXU push for the whole batch tile; accumulate in f32.
    acc = lax.dot_general(
        w_ref[...], xcol_ref[...],
        dimension_numbers=(((1,), (0,)), ((), ())),
        preferred_element_type=jnp.float32)      # (Cout, B_tile*S)

    y = acc + shift_ref[...]                     # BN scale already folded into w_ref
    if apply_relu:
        y = jnp.maximum(y, 0.0)
    y = y.astype(o_ref.dtype)
    for b in range(b_tile):                      # S is a lane multiple here -> aligned slices
        o_ref[b, :, :] = y[:, b * s:(b + 1) * s]


def _pick_batch_tile(n, max_tile):
    for cand in range(min(n, max_tile), 0, -1):
        if n % cand == 0:
            return cand
    return 1


def basic_conv_pallas(x_nchw, weight_oihw, bn_gamma=None, bn_beta=None,
                      bn_mean=None, bn_var=None, conv_bias=None, *,
                      padding=(1, 0), eps=1e-5, relu=True, bn=True,
                      out_dtype=None, max_batch_tile=8):
    """BasicConv forward: (N, Cin, H, W) -> (N, Cout, H_out, W_out). NCHW in, NCHW out."""
    n, cin, h, w = x_nchw.shape
    cout, cin_w, kh, kw = weight_oihw.shape
    assert cin == cin_w, "groups != 1 not supported in this kernel"
    assert kw == 1, "only kernel_size = (kh, 1) implemented (trip_att configuration)"
    ph, pw = padding
    assert pw == 0, "only padding = (ph, 0) implemented (trip_att configuration)"
    h_out = h + 2 * ph - kh + 1
    assert h_out > 0, "kernel height larger than padded input height"
    s = h_out * w

    compute_dtype = x_nchw.dtype                 # no wrapper-side cast of activations
    out_dtype = x_nchw.dtype if out_dtype is None else out_dtype

    # --- fold eval-mode BN (and optional conv bias) into (weight, shift), in f32 -----------
    w_f32 = weight_oihw[:, :, :, 0].astype(jnp.float32)          # (Cout, Cin, kh)
    if bn:
        scale = bn_gamma.astype(jnp.float32) / jnp.sqrt(bn_var.astype(jnp.float32) + eps)
        shift = bn_beta.astype(jnp.float32) - bn_mean.astype(jnp.float32) * scale
    else:
        scale = jnp.ones((cout,), jnp.float32)
        shift = jnp.zeros((cout,), jnp.float32)
    if conv_bias is not None:
        shift = shift + conv_bias.astype(jnp.float32) * scale
    w_f32 = w_f32 * scale[:, None, None]                         # fold in f32, then cast
    # (Cout, Cin, kh) -> (Cout, kh, Cin) -> (Cout, kh*Cin): rows tap-major, matching xcol.
    w2d = jnp.transpose(w_f32, (0, 2, 1)).reshape(cout, kh * cin).astype(compute_dtype)
    shift2d = shift.reshape(cout, 1)

    x_flat = x_nchw.reshape(n, cin, h * w)       # free reshape (contiguous), no pad pass

    b_tile = _pick_batch_tile(n, max_batch_tile)
    grid = (n // b_tile,)

    kernel = functools.partial(
        _basic_conv_kernel, kh=kh, ph=ph, h=h, w=w, h_out=h_out,
        b_tile=b_tile, cin=cin, apply_relu=relu)

    comp_b = jnp.dtype(compute_dtype).itemsize
    out_b = jnp.dtype(out_dtype).itemsize
    est = (2 * (b_tile * cin * h * w * comp_b          # double-buffered x block
                + b_tile * cout * s * out_b            # double-buffered out block
                + cout * kh * cin * comp_b + cout * 4)
           + kh * cin * b_tile * s * comp_b)           # im2col scratch
    vmem_limit = int(min(max(2 * est, 16 << 20), 32 << 20))   # safe on v5e/v6e/v7x

    out_flat = pl.pallas_call(
        kernel,
        out_shape=jax.ShapeDtypeStruct((n, cout, s), out_dtype),
        grid_spec=pltpu.PrefetchScalarGridSpec(
            num_scalar_prefetch=0,
            grid=grid,
            in_specs=[
                pl.BlockSpec((b_tile, cin, h * w), lambda i: (i, 0, 0)),
                pl.BlockSpec((cout, kh * cin), lambda i: (0, 0)),
                pl.BlockSpec((cout, 1), lambda i: (0, 0)),
            ],
            out_specs=pl.BlockSpec((b_tile, cout, s), lambda i: (i, 0, 0)),
            scratch_shapes=[pltpu.VMEM((kh * cin, b_tile * s), compute_dtype)],
        ),
        compiler_params=pltpu.CompilerParams(
            dimension_semantics=("parallel",),         # batch-tile axis; megacore on v7x
            vmem_limit_bytes=vmem_limit),
    )(x_flat, w2d, shift2d)

    return out_flat.reshape(n, cout, h_out, w)         # free reshape, already channel-first


def basic_conv_reference(x_nchw, weight_oihw, bn_gamma, bn_beta, bn_mean, bn_var,
                         *, padding=(1, 0), eps=1e-5, relu=True, bn=True):
    """Plain-JAX reference matching PyTorch BasicConv (BN in eval mode)."""
    y = lax.conv_general_dilated(
        x_nchw, weight_oihw,
        window_strides=(1, 1),
        padding=((padding[0], padding[0]), (padding[1], padding[1])),
        dimension_numbers=("NCHW", "OIHW", "NCHW"))
    if bn:
        scale = (bn_gamma / jnp.sqrt(bn_var + eps)).reshape(1, -1, 1, 1)
        shift = (bn_beta - bn_mean * bn_gamma / jnp.sqrt(bn_var + eps)).reshape(1, -1, 1, 1)
        y = y * scale + shift
    if relu:
        y = jnp.maximum(y, 0.0)
    return y


if __name__ == "__main__":
    # BasicConv(in_planes=4, out_planes=8, kernel_size=(3, 1), padding=(1, 0),
    #           relu=True, bn=True, bias=False)
    N, CIN, H, W = 2, 4, 16, 16
    COUT, KH, KW = 8, 3, 1
    PADDING = (1, 0)

    key = jax.random.PRNGKey(0)
    kx, kw_, kg, kb, km, kv = jax.random.split(key, 6)

    x = jax.random.normal(kx, (N, CIN, H, W), dtype=jnp.float32)
    conv_weight = jax.random.normal(kw_, (COUT, CIN, KH, KW), dtype=jnp.float32) * 0.1
    bn_gamma = 1.0 + 0.1 * jax.random.normal(kg, (COUT,), dtype=jnp.float32)
    bn_beta = 0.05 * jax.random.normal(kb, (COUT,), dtype=jnp.float32)
    bn_mean = 0.1 * jax.random.normal(km, (COUT,), dtype=jnp.float32)
    bn_var = 1.0 + 0.1 * jax.random.uniform(kv, (COUT,), dtype=jnp.float32)

    ref = basic_conv_reference(x, conv_weight, bn_gamma, bn_beta, bn_mean, bn_var,
                               padding=PADDING, relu=True, bn=True)

    # f32 path (tight correctness check).
    out = basic_conv_pallas(x, conv_weight, bn_gamma, bn_beta, bn_mean, bn_var,
                            padding=PADDING, relu=True, bn=True)
    out = jax.block_until_ready(out)
    assert out.shape == ref.shape == (N, COUT, H, W), (out.shape, ref.shape)
    assert jnp.allclose(out, ref, atol=1e-4, rtol=1e-4), float(jnp.max(jnp.abs(out - ref)))

    # bf16 activation path: activations arrive in bf16 (cast done persistently upstream, not
    # inside the wrapper); BN fold stays f32; output emitted in bf16 (half the writeback).
    out_bf16 = basic_conv_pallas(x.astype(jnp.bfloat16), conv_weight, bn_gamma, bn_beta,
                                 bn_mean, bn_var, padding=PADDING, relu=True, bn=True,
                                 out_dtype=jnp.bfloat16)
    out_bf16 = jax.block_until_ready(out_bf16)
    assert out_bf16.shape == ref.shape and out_bf16.dtype == jnp.bfloat16
    assert jnp.allclose(out_bf16.astype(jnp.float32), ref, atol=1e-1, rtol=1e-1), \
        float(jnp.max(jnp.abs(out_bf16.astype(jnp.float32) - ref)))

    print("KERNEL_OK")
</pallas_src>

<mosaic_0001>
module attributes {stable_mosaic.version = 11 : i64} {
  func.func @_basic_conv_kernel(%arg0: i32, %arg1: memref<2x4x256xf32, #tpu.memory_space<vmem>>, %arg2: memref<8x12xf32, #tpu.memory_space<vmem>>, %arg3: memref<8x1xf32, #tpu.memory_space<vmem>>, %arg4: memref<2x8x256xf32, #tpu.memory_space<vmem>>, %arg5: memref<12x512xf32, #tpu.memory_space<vmem>>) attributes {dimension_semantics = [#tpu.dimension_semantics<parallel>], iteration_bounds = array<i64: 1>, scalar_prefetch = 0 : i64, scratch_operands = 1 : i64, tpu.core_type = #tpu.core_type<tc>, window_params = [{transform_indices = @transform_0, window_bounds = array<i64: 2, 4, 256>}, {pipeline_mode = #tpu.pipeline_mode<synchronous>, transform_indices = @transform_1, window_bounds = array<i64: 8, 12>}, {pipeline_mode = #tpu.pipeline_mode<synchronous>, transform_indices = @transform_2, window_bounds = array<i64: 8, 1>}, {transform_indices = @transform_3, window_bounds = array<i64: 2, 8, 256>}]} {
    %cst = arith.constant 0.000000e+00 : f32
    %0 = vector.broadcast %cst : f32 to vector<4x16xf32>
    %c0 = arith.constant 0 : index
    %c0_0 = arith.constant 0 : index
    %1 = vector.load %arg5[%c0, %c0_0] : memref<12x512xf32, #tpu.memory_space<vmem>>, vector<4x16xf32>
    tpu.vector_store %arg5[%c0, %c0_0], %0 {strides = array<i32>} : memref<12x512xf32, #tpu.memory_space<vmem>>, vector<4x16xf32>,
    %c0_1 = arith.constant 0 : index
    %c0_2 = arith.constant 0 : index
    %c0_3 = arith.constant 0 : index
    %2 = vector.load %arg1[%c0_1, %c0_2, %c0_3] : memref<2x4x256xf32, #tpu.memory_space<vmem>>, vector<1x4x240xf32>
    %3 = vector.shape_cast %2 : vector<1x4x240xf32> to vector<4x240xf32>
    %c0_4 = arith.constant 0 : index
    %c16 = arith.constant 16 : index
    %4 = vector.load %arg5[%c0_4, %c16] : memref<12x512xf32, #tpu.memory_space<vmem>>, vector<4x240xf32>
    tpu.vector_store %arg5[%c0_4, %c16], %3 {strides = array<i32>} : memref<12x512xf32, #tpu.memory_space<vmem>>, vector<4x240xf32>,
    %cst_5 = arith.constant 0.000000e+00 : f32
    %5 = vector.broadcast %cst_5 : f32 to vector<4x16xf32>
    %c0_6 = arith.constant 0 : index
    %c256 = arith.constant 256 : index
    %6 = vector.load %arg5[%c0_6, %c256] : memref<12x512xf32, #tpu.memory_space<vmem>>, vector<4x16xf32>
    tpu.vector_store %arg5[%c0_6, %c256], %5 {strides = array<i32>} : memref<12x512xf32, #tpu.memory_space<vmem>>, vector<4x16xf32>,
    %c1 = arith.constant 1 : index
    %c0_7 = arith.constant 0 : index
    %c0_8 = arith.constant 0 : index
    %7 = vector.load %arg1[%c1, %c0_7, %c0_8] : memref<2x4x256xf32, #tpu.memory_space<vmem>>, vector<1x4x240xf32>
    %8 = vector.shape_cast %7 : vector<1x4x240xf32> to vector<4x240xf32>
    %c0_9 = arith.constant 0 : index
    %c272 = arith.constant 272 : index
    %9 = vector.load %arg5[%c0_9, %c272] : memref<12x512xf32, #tpu.memory_space<vmem>>, vector<4x240xf32>
    tpu.vector_store %arg5[%c0_9, %c272], %8 {strides = array<i32>} : memref<12x512xf32, #tpu.memory_space<vmem>>, vector<4x240xf32>,
    %c0_10 = arith.constant 0 : index
    %c0_11 = arith.constant 0 : index
    %c0_12 = arith.constant 0 : index
    %10 = vector.load %arg1[%c0_10, %c0_11, %c0_12] : memref<2x4x256xf32, #tpu.memory_space<vmem>>, vector<1x4x256xf32>
    %11 = vector.shape_cast %10 : vector<1x4x256xf32> to vector<4x256xf32>
    %c4 = arith.constant 4 : index
    %c0_13 = arith.constant 0 : index
    %12 = vector.load %arg5[%c4, %c0_13] : memref<12x512xf32, #tpu.memory_space<vmem>>, vector<4x256xf32>
    tpu.vector_store %arg5[%c4, %c0_13], %11 {strides = array<i32>} : memref<12x512xf32, #tpu.memory_space<vmem>>, vector<4x256xf32>,
    %c1_14 = arith.constant 1 : index
    %c0_15 = arith.constant 0 : index
    %c0_16 = arith.constant 0 : index
    %13 = vector.load %arg1[%c1_14, %c0_15, %c0_16] : memref<2x4x256xf32, #tpu.memory_space<vmem>>, vector<1x4x256xf32>
    %14 = vector.shape_cast %13 : vector<1x4x256xf32> to vector<4x256xf32>
    %c4_17 = arith.constant 4 : index
    %c256_18 = arith.constant 256 : index
    %15 = vector.load %arg5[%c4_17, %c256_18] : memref<12x512xf32, #tpu.memory_space<vmem>>, vector<4x256xf32>
    tpu.vector_store %arg5[%c4_17, %c256_18], %14 {strides = array<i32>} : memref<12x512xf32, #tpu.memory_space<vmem>>, vector<4x256xf32>,
    %cst_19 = arith.constant 0.000000e+00 : f32
    %16 = vector.broadcast %cst_19 : f32 to vector<4x16xf32>
    %c8 = arith.constant 8 : index
    %c240 = arith.constant 240 : index
    %17 = vector.load %arg5[%c8, %c240] : memref<12x512xf32, #tpu.memory_space<vmem>>, vector<4x16xf32>
    tpu.vector_store %arg5[%c8, %c240], %16 {strides = array<i32>} : memref<12x512xf32, #tpu.memory_space<vmem>>, vector<4x16xf32>,
    %c0_20 = arith.constant 0 : index
    %c0_21 = arith.constant 0 : index
    %c16_22 = arith.constant 16 : index
    %18 = vector.load %arg1[%c0_20, %c0_21, %c16_22] : memref<2x4x256xf32, #tpu.memory_space<vmem>>, vector<1x4x240xf32>
    %19 = vector.shape_cast %18 : vector<1x4x240xf32> to vector<4x240xf32>
    %c8_23 = arith.constant 8 : index
    %c0_24 = arith.constant 0 : index
    %20 = vector.load %arg5[%c8_23, %c0_24] : memref<12x512xf32, #tpu.memory_space<vmem>>, vector<4x240xf32>
    tpu.vector_store %arg5[%c8_23, %c0_24], %19 {strides = array<i32>} : memref<12x512xf32, #tpu.memory_space<vmem>>, vector<4x240xf32>,
    %cst_25 = arith.constant 0.000000e+00 : f32
    %21 = vector.broadcast %cst_25 : f32 to vector<4x16xf32>
    %c8_26 = arith.constant 8 : index
    %c496 = arith.constant 496 : index
    %22 = vector.load %arg5[%c8_26, %c496] : memref<12x512xf32, #tpu.memory_space<vmem>>, vector<4x16xf32>
    tpu.vector_store %arg5[%c8_26, %c496], %21 {strides = array<i32>} : memref<12x512xf32, #tpu.memory_space<vmem>>, vector<4x16xf32>,
    %c1_27 = arith.constant 1 : index
    %c0_28 = arith.constant 0 : index
    %c16_29 = arith.constant 16 : index
    %23 = vector.load %arg1[%c1_27, %c0_28, %c16_29] : memref<2x4x256xf32, #tpu.memory_space<vmem>>, vector<1x4x240xf32>
    %24 = vector.shape_cast %23 : vector<1x4x240xf32> to vector<4x240xf32>
    %c8_30 = arith.constant 8 : index
    %c256_31 = arith.constant 256 : index
    %25 = vector.load %arg5[%c8_30, %c256_31] : memref<12x512xf32, #tpu.memory_space<vmem>>, vector<4x240xf32>
    tpu.vector_store %arg5[%c8_30, %c256_31], %24 {strides = array<i32>} : memref<12x512xf32, #tpu.memory_space<vmem>>, vector<4x240xf32>,
    %c0_32 = arith.constant 0 : index
    %c0_33 = arith.constant 0 : index
    %26 = vector.load %arg2[%c0_32, %c0_33] : memref<8x12xf32, #tpu.memory_space<vmem>>, vector<8x12xf32>
    %c0_34 = arith.constant 0 : index
    %c0_35 = arith.constant 0 : index
    %27 = vector.load %arg5[%c0_34, %c0_35] : memref<12x512xf32, #tpu.memory_space<vmem>>, vector<12x512xf32>
    %cst_36 = arith.constant dense<0.000000e+00> : vector<8x512xf32>
    %28 = tpu.matmul %26, %27, %cst_36 {dimension_numbers = #tpu.dot_dimension_numbers<[1], [0], [0], [1], [0, 0, 1, 1], [], []>} : vector<8x12xf32>, vector<12x512xf32>, vector<8x512xf32> -> vector<8x512xf32>
    %c0_37 = arith.constant 0 : index
    %c0_38 = arith.constant 0 : index
    %29 = vector.load %arg3[%c0_37, %c0_38] : memref<8x1xf32, #tpu.memory_space<vmem>>, vector<8x1xf32>
    %30 = vector.broadcast %29 : vector<8x1xf32> to vector<8x512xf32>
    %31 = arith.addf %28, %30 : vector<8x512xf32>
    %cst_39 = arith.constant 0.000000e+00 : f32
    %32 = vector.broadcast %cst_39 : f32 to vector<8x512xf32>
    %33 = arith.maximumf %31, %32 : vector<8x512xf32>
    %34 = vector.extract_strided_slice %33 {offsets = [0, 0], sizes = [8, 256], strides = [1, 1]} : vector<8x512xf32> to vector<8x256xf32>
    %c0_40 = arith.constant 0 : index
    %c0_41 = arith.constant 0 : index
    %c0_42 = arith.constant 0 : index
    %35 = vector.load %arg4[%c0_40, %c0_41, %c0_42] : memref<2x8x256xf32, #tpu.memory_space<vmem>>, vector<1x8x256xf32>
    %36 = vector.shape_cast %35 : vector<1x8x256xf32> to vector<8x256xf32>
    %37 = vector.shape_cast %34 : vector<8x256xf32> to vector<1x8x256xf32>
    tpu.vector_store %arg4[%c0_40, %c0_41, %c0_42], %37 {strides = array<i32>} : memref<2x8x256xf32, #tpu.memory_space<vmem>>, vector<1x8x256xf32>,
    %38 = vector.extract_strided_slice %33 {offsets = [0, 256], sizes = [8, 256], strides = [1, 1]} : vector<8x512xf32> to vector<8x256xf32>
    %c1_43 = arith.constant 1 : index
    %c0_44 = arith.constant 0 : index
    %c0_45 = arith.constant 0 : index
    %39 = vector.load %arg4[%c1_43, %c0_44, %c0_45] : memref<2x8x256xf32, #tpu.memory_space<vmem>>, vector<1x8x256xf32>
    %40 = vector.shape_cast %39 : vector<1x8x256xf32> to vector<8x256xf32>
    %41 = vector.shape_cast %38 : vector<8x256xf32> to vector<1x8x256xf32>
    tpu.vector_store %arg4[%c1_43, %c0_44, %c0_45], %41 {strides = array<i32>} : memref<2x8x256xf32, #tpu.memory_space<vmem>>, vector<1x8x256xf32>,
    return
  }
  func.func @transform_0(%arg0: i32) -> (i32, i32, i32) {
    %c0_i32 = arith.constant 0 : i32
    %c0_i32_0 = arith.constant 0 : i32
    %c0_i32_1 = arith.constant 0 : i32
    return %arg0, %c0_i32, %c0_i32_0 : i32, i32, i32
  }
  func.func @transform_1(%arg0: i32) -> (i32, i32) {
    %c0_i32 = arith.constant 0 : i32
    %c0_i32_0 = arith.constant 0 : i32
    %c0_i32_1 = arith.constant 0 : i32
    return %c0_i32, %c0_i32_0 : i32, i32
  }
  func.func @transform_2(%arg0: i32) -> (i32, i32) {
    %c0_i32 = arith.constant 0 : i32
    %c0_i32_0 = arith.constant 0 : i32
    %c0_i32_1 = arith.constant 0 : i32
    return %c0_i32, %c0_i32_0 : i32, i32
  }
  func.func @transform_3(%arg0: i32) -> (i32, i32, i32) {
    %c0_i32 = arith.constant 0 : i32
    %c0_i32_0 = arith.constant 0 : i32
    %c0_i32_1 = arith.constant 0 : i32
    return %arg0, %c0_i32, %c0_i32_0 : i32, i32, i32
  }
}

</mosaic_0001>

<llo_original>
// kernel: tpu_custom_call.1
$region0: #{tpu_custom_call.1}
  #allocation0 [shape = 'u32[]', space=smem, size = 0x4, offset = 0x4, fixed_abs, tag = 'smem constant byte address 0x4 - core index']
  #allocation1 [shape = 'u32[72,128]{1,0:T(1,128)}', space=vmem, size = 0x9000, scoped, tag = 'internal scratch']
  #allocation2 [shape = 'f32[12,512]{1,0:T(8,128)}', space=vmem, size = 0x8000, scoped, tag = 'scratch operand']
  %s0 = inlined_call_operand.hbm [shape: f32[2,4,256], index: 0, kind: input, shape index: {}]
  %s1 = inlined_call_operand.vmem [shape: f32[8,12], index: 1, kind: input, shape index: {}]
  %s2 = inlined_call_operand.vmem [shape: f32[8,1], index: 2, kind: input, shape index: {}]
  %s3 = inlined_call_operand.hbm [shape: f32[2,8,256], index: 3, kind: output, shape index: {}]
  %s4 = sld [smem:[#allocation0]]
  $region26: #{tpu_custom_call.1} parent=0
    _
  %s6 = ssub.s32 1, %s4
  %s7 = scalar_select 0, %s6, %s4
  $region1: #{tpu_custom_call.1} parent=0
    #allocation3 [shape = 'u8[8192]{0}', space=vmem, size = 0x2000, scoped, tag = 'input window, operand 0, single buffered']
    #allocation4 [shape = 's32[1]{0}', space=sflag, size = 0x4, scoped, tag = 'scoped memory for tpu_custom_call.1']
    #allocation5 [shape = 's32[1]{0}', space=sflag, size = 0x4, scoped, tag = 'scoped memory for tpu_custom_call.1']
    #allocation6 [shape = 'u8[16384]{0}', space=vmem, size = 0x4000, scoped, tag = 'output window, operand 0, single buffered']
    %8 = vsyncpa [#allocation4], 0
    %9 = vsyncpa [#allocation5], 0
    // Predicated region
    $region2: #{tpu_custom_call.1} parent=1 // pred_check
      _
    $region3: #{tpu_custom_call.1} parent=1 // pred_check_branch
      %11 = sbr.rel (0) target = $region5
    $region4: #{tpu_custom_call.1} parent=1 // pred_region
      %13 = vsyncadd [#allocation4], 0
      %s14 = sshll.u32 %s0, 4
      %s15 = int_to_ptr.hbm [resolvable:$true] %s14
      %s16 = sshll.u32 [#allocation3], 4
      %s17 = int_to_ptr.vmem [resolvable:$true] %s16
      %22 = dma.hbm_to_vmem [thread:$0]  %s15, 256, %s17, [#allocation4], 128, 128, 8
    $region5: #{tpu_custom_call.1} parent=1 // pred_fallthru
      _
    // Predicated region
    $region6: #{tpu_custom_call.1} parent=1 // pred_check
      _
    $region7: #{tpu_custom_call.1} parent=1 // pred_check_branch
      %24 = sbr.rel (0) target = $region9
    $region8: #{tpu_custom_call.1} parent=1 // pred_region
      _
    $region9: #{tpu_custom_call.1} parent=1 // pred_fallthru
      _
    // Predicated region
    $region10: #{tpu_custom_call.1} parent=1 // pred_check
      _
    $region11: #{tpu_custom_call.1} parent=1 // pred_check_branch
      %26 = sbr.rel (0) target = $region13
    $region12: #{tpu_custom_call.1} parent=1 // pred_region
      _
    $region13: #{tpu_custom_call.1} parent=1 // pred_fallthru
      _
    // Predicated region
    $region14: #{tpu_custom_call.1} parent=1 // pred_check
      _
    $region15: #{tpu_custom_call.1} parent=1 // pred_check_branch
      %28 = sbr.rel (0) target = $region17
    $region16: #{tpu_custom_call.1} parent=1 // pred_region
      %30 = dma.done [#allocation4], 256
    $region17: #{tpu_custom_call.1} parent=1 // pred_fallthru
      _
    %vm31 = vcmask 125952
    %32 = vst.msk [vmem:[#allocation2] sm:$0xf] %vm31, 0.0
    %v33 = vld [vmem:[#allocation3] sm:$0xff]
    %35 = vst [vmem:[#allocation1] ss:$2 sm:$0xff] %v33
    %v36 = vld.sshfl [vmem:[#allocation1] sm:$0xff pattern:$0x75316420]
    %v37 = vld.sshfl [vmem:[#allocation1 + $0x8] sm:$0xff pattern:$0x75316420]
    %38 = vrot.lane.b32.xlu0 %v36, 16
    %v39 = vpop.permute.xlu0 %38
    %40 = vrot.lane.b32.xlu0 %v37, 16
    %v41 = vpop.permute.xlu0 %40
    %vm42 = vcmask 130048
    %v43 = vsel %vm42, %v39, %v41
    %vm46 = vcmask 1043584
    %47 = vst.msk [vmem:[#allocation2] sm:$0xf] %vm46, %v39
    %48 = vst [vmem:[#allocation2 + $0x8] sm:$0xf] %v43
    %49 = vst.msk [vmem:[#allocation2 + $0x10] sm:$0xf] %vm31, 0.0
    %s50 = scalar_lea.vmem [#allocation3], 8
    %v51 = vld [vmem:[%s50] sm:$0xff]
    %53 = vst [vmem:[#allocation1] ss:$2 sm:$0xff] %v51
    %v54 = vld.sshfl [vmem:[#allocation1] sm:$0xff pattern:$0x75316420]
    %v55 = vld.sshfl [vmem:[#allocation1 + $0x8] sm:$0xff pattern:$0x75316420]
    %56 = vrot.lane.b32.xlu0 %v54, 16
    %v57 = vpop.permute.xlu0 %56
    %58 = vrot.lane.b32.xlu0 %v55, 16
    %v59 = vpop.permute.xlu0 %58
    %v60 = vsel %vm42, %v57, %v59
    %63 = vst.msk [vmem:[#allocation2 + $0x10] sm:$0xf] %vm46, %v57
    %64 = vst [vmem:[#allocation2 + $0x18] sm:$0xf] %v60
    %v65 = vld [vmem:[#allocation3] sm:$0xff]
    %s67 = scalar_lea.vmem [#allocation1], 1
    %68 = vst [vmem:[%s67] ss:$2 sm:$0xff] %v65
    %v69 = vld.sshfl [vmem:[#allocation1] sm:$0xff pattern:$0x75316420]
    %v70 = vld.sshfl [vmem:[#allocation1 + $0x8] sm:$0xff pattern:$0x75316420]
    %73 = vst [vmem:[#allocation2] sm:$0xf0] %v69
    %74 = vst [vmem:[#allocation2 + $0x8] sm:$0xf0] %v70
    %v75 = vld [vmem:[%s50] sm:$0xff]
    %s77 = scalar_lea.vmem [#allocation1], 1
    %78 = vst [vmem:[%s77] ss:$2 sm:$0xff] %v75
    %v79 = vld.sshfl [vmem:[#allocation1] sm:$0xff pattern:$0x75316420]
    %v80 = vld.sshfl [vmem:[#allocation1 + $0x8] sm:$0xff pattern:$0x75316420]
    %83 = vst [vmem:[#allocation2 + $0x10] sm:$0xf0] %v79
    %84 = vst [vmem:[#allocation2 + $0x18] sm:$0xf0] %v80
    %vm85 = vcmask 1044352
    %86 = vst.msk [vmem:[#allocation2 + $0x28] sm:$0xf] %vm85, 0.0
    %v87 = vld [vmem:[#allocation3] sm:$0xff]
    %89 = vst [vmem:[#allocation1] ss:$2 sm:$0xff] %v87
    %v90 = vld.sshfl [vmem:[#allocation1] sm:$0xff pattern:$0x75316420]
    %v91 = vld.sshfl [vmem:[#allocation1 + $0x8] sm:$0xff pattern:$0x75316420]
    %92 = vrot.lane.b32.xlu0 %v90, 112
    %v93 = vpop.permute.xlu0 %92
    %94 = vrot.lane.b32.xlu0 %v91, 112
    %v95 = vpop.permute.xlu0 %94
    %vm96 = vcmask 916480
    %v97 = vsel %vm96, %v93, %v95
    %100 = vst [vmem:[#allocation2 + $0x20] sm:$0xf] %v97
    %vm101 = vcmask 912384
    %102 = vst.msk [vmem:[#allocation2 + $0x28] sm:$0xf] %vm101, %v95
    %103 = vst.msk [vmem:[#allocation2 + $0x38] sm:$0xf] %vm85, 0.0
    %v104 = vld [vmem:[%s50] sm:$0xff]
    %106 = vst [vmem:[#allocation1] ss:$2 sm:$0xff] %v104
    %v107 = vld.sshfl [vmem:[#allocation1] sm:$0xff pattern:$0x75316420]
    %v108 = vld.sshfl [vmem:[#allocation1 + $0x8] sm:$0xff pattern:$0x75316420]
    %109 = vrot.lane.b32.xlu0 %v107, 112
    %v110 = vpop.permute.xlu0 %109
    %111 = vrot.lane.b32.xlu0 %v108, 112
    %v112 = vpop.permute.xlu0 %111
    %v113 = vsel %vm96, %v110, %v112
    %116 = vst [vmem:[#allocation2 + $0x30] sm:$0xf] %v113
    %117 = vst.msk [vmem:[#allocation2 + $0x38] sm:$0xf] %vm101, %v112
    %v118 = vld [vmem:[%s1] sm:$0xff]
    %v119 = vld [vmem:[#allocation2] sm:$0xff]
    %v120 = vld [vmem:[#allocation2 + $0x8] sm:$0xff]
    %v121 = vld [vmem:[#allocation2 + $0x10] sm:$0xff]
    %v122 = vld [vmem:[#allocation2 + $0x18] sm:$0xff]
    %v123 = vld [vmem:[#allocation2 + $0x20] sm:$0xf]
    %v124 = vld [vmem:[#allocation2 + $0x28] sm:$0xf]
    %v125 = vld [vmem:[#allocation2 + $0x30] sm:$0xf]
    %v126 = vld [vmem:[#allocation2 + $0x38] sm:$0xf]
    %v127 = vld [vmem:[%s2] sm:$0xff]
    %129 = vset.pattern.permute.xlu0 0
    %130 = vperm.xlu0 %129, %v127
    %v131 = vpop.permute.xlu0 %130
    %vm133 = vcmask 97280
    %v135 = vsel %vm133, %v118, 0
    %vm137 = vcmask 1043456
    %v139 = vsel %vm137, %v123, 0
    %v142 = vsel %vm137, %v124, 0
    %v145 = vsel %vm137, %v125, 0
    %v148 = vsel %vm137, %v126, 0
    %150 = vmatpush.msra.mxu0 0.0
    %151 = vmatpush.msra.mxu0 0.0
    %152 = vmatpush.msra.mxu0 0.0
    %153 = vmatpush.msra.mxu0 0.0
    %154 = vmatpush.msra.mxu0 0.0
    %155 = vmatpush.msra.mxu0 0.0
    %156 = vmatpush.msra.mxu0 0.0
    %157 = vmatpush.msra.mxu0 0.0
    %158 = vmatpush.msra.mxu0 0.0
    %159 = vmatpush.msra.mxu0 0.0
    %160 = vmatpush.msra.mxu0 0.0
    %161 = vmatpush.msra.mxu0 0.0
    %162 = vmatpush.msra.mxu0 0.0
    %163 = vmatpush.msra.mxu0 0.0
    %164 = vmatpush.msra.mxu0 %v139
    %165 = vmatpush.msra.mxu0 %v119
    %166 = vmatmul.f32.gmra.mxu0 %v135
    %v167 = vpop.f32.mrf.mxu0
    %v168 = vadd.f32 %v131, %v167
    %169 = vdwg.mxu0
    %170 = vmatpush.msra.mxu0 0.0
    %171 = vmatpush.msra.mxu0 0.0
    %172 = vmatpush.msra.mxu0 0.0
    %173 = vmatpush.msra.mxu0 0.0
    %174 = vmatpush.msra.mxu0 0.0
    %175 = vmatpush.msra.mxu0 0.0
    %176 = vmatpush.msra.mxu0 0.0
    %177 = vmatpush.msra.mxu0 0.0
    %178 = vmatpush.msra.mxu0 0.0
    %179 = vmatpush.msra.mxu0 0.0
    %180 = vmatpush.msra.mxu0 0.0
    %181 = vmatpush.msra.mxu0 0.0
    %182 = vmatpush.msra.mxu0 0.0
    %183 = vmatpush.msra.mxu0 0.0
    %184 = vmatpush.msra.mxu0 %v142
    %185 = vmatpush.msra.mxu0 %v120
    %186 = vmatmul.f32.gmra.mxu0 %v135
    %v187 = vpop.f32.mrf.mxu0
    %v188 = vadd.f32 %v131, %v187
    %189 = vdwg.mxu0
    %190 = vmatpush.msra.mxu0 0.0
    %191 = vmatpush.msra.mxu0 0.0
    %192 = vmatpush.msra.mxu0 0.0
    %193 = vmatpush.msra.mxu0 0.0
    %194 = vmatpush.msra.mxu0 0.0
    %195 = vmatpush.msra.mxu0 0.0
    %196 = vmatpush.msra.mxu0 0.0
    %197 = vmatpush.msra.mxu0 0.0
    %198 = vmatpush.msra.mxu0 0.0
    %199 = vmatpush.msra.mxu0 0.0
    %200 = vmatpush.msra.mxu0 0.0
    %201 = vmatpush.msra.mxu0 0.0
    %202 = vmatpush.msra.mxu0 0.0
    %203 = vmatpush.msra.mxu0 0.0
    %204 = vmatpush.msra.mxu0 %v145
    %205 = vmatpush.msra.mxu0 %v121
    %206 = vmatmul.f32.gmra.mxu0 %v135
    %v207 = vpop.f32.mrf.mxu0
    %v208 = vadd.f32 %v131, %v207
    %209 = vdwg.mxu0
    %210 = vmatpush.msra.mxu0 0.0
    %211 = vmatpush.msra.mxu0 0.0
    %212 = vmatpush.msra.mxu0 0.0
    %213 = vmatpush.msra.mxu0 0.0
    %214 = vmatpush.msra.mxu0 0.0
    %215 = vmatpush.msra.mxu0 0.0
    %216 = vmatpush.msra.mxu0 0.0
    %217 = vmatpush.msra.mxu0 0.0
    %218 = vmatpush.msra.mxu0 0.0
    %219 = vmatpush.msra.mxu0 0.0
    %220 = vmatpush.msra.mxu0 0.0
    %221 = vmatpush.msra.mxu0 0.0
    %222 = vmatpush.msra.mxu0 0.0
    %223 = vmatpush.msra.mxu0 0.0
    %224 = vmatpush.msra.mxu0 %v148
    %225 = vmatpush.msra.mxu0 %v122
    %226 = vmatmul.f32.gmra.mxu0 %v135
    %v227 = vpop.f32.mrf.mxu0
    %v228 = vadd.f32 %v131, %v227
    %229 = vdwg.mxu0
    %v230 = vmax.f32 %v168, 0.0
    %v231 = vmax.f32 %v188, 0.0
    %v232 = vmax.f32 %v208, 0.0
    %v233 = vmax.f32 %v228, 0.0
    %234 = vst [vmem:[#allocation6] sm:$0xff] %v230
    %235 = vst [vmem:[#allocation6 + $0x8] sm:$0xff] %v231
    %s236 = scalar_lea.vmem [#allocation6], 16
    %237 = vst [vmem:[%s236] sm:$0xff] %v232
    %238 = vst [vmem:[%s236 + $0x8] sm:$0xff] %v233
    // Predicated region
    $region18: #{tpu_custom_call.1} parent=1 // pred_check
      _
    $region19: #{tpu_custom_call.1} parent=1 // pred_check_branch
      %240 = sbr.rel (0) target = $region21
    $region20: #{tpu_custom_call.1} parent=1 // pred_region
      %242 = vsyncadd [#allocation5], 0
      %s243 = sshll.u32 [#allocation6], 4
      %s244 = int_to_ptr.vmem [resolvable:$true] %s243
      %s245 = sshll.u32 %s3, 4
      %s246 = int_to_ptr.hbm [resolvable:$true] %s245
      %251 = dma.vmem_to_hbm [thread:$0]  %s244, 512, %s246, [#allocation5], 256, 256, 16
    $region21: #{tpu_custom_call.1} parent=1 // pred_fallthru
      _
    // Predicated region
    $region22: #{tpu_custom_call.1} parent=1 // pred_check
      _
    $region23: #{tpu_custom_call.1} parent=1 // pred_check_branch
      %253 = sbr.rel (0) target = $region25
    $region24: #{tpu_custom_call.1} parent=1 // pred_region
      %255 = dma.done [#allocation5], 512
    $region25: #{tpu_custom_call.1} parent=1 // pred_fallthru
      _
    %256 = vsyncpa [#allocation4], 1
    %257 = vsyncpa [#allocation5], 1

</llo_original>
